<compile_context>
chip_gen: v7x
topology: tpu7x:2x2x1
jax: 0.10.0
libtpu: 0.0.40
codegen_flags: <defaults>
</compile_context>

<pallas_src>
import functools
import math

import jax
import jax.numpy as jnp
from jax import lax
from jax.experimental import pallas as pl
from jax.experimental.pallas import tpu as pltpu


_INV_SQRT2 = 1.0 / math.sqrt(2.0)
_TANH_C = math.sqrt(2.0 / math.pi)


def _round_up(x, m):
    return ((x + m - 1) // m) * m


def _gelu_exact(x):
    # Exact erf GELU (matches the PyTorch reference); multiply by 1/sqrt(2), no divide.
    return x * (0.5 * (1.0 + lax.erf(x * _INV_SQRT2)))


def _gelu_tanh(x):
    # tanh-approx GELU: transcendental goes to the EUP slot (cheap epilogue on v6e/v7x).
    inner = _TANH_C * (x + 0.044715 * (x * x * x))
    return 0.5 * x * (1.0 + jnp.tanh(inner))


def _make_kernel(approximate_gelu: bool):
    act = _gelu_tanh if approximate_gelu else _gelu_exact

    def kernel(x_ref, w_ref, b_ref, o_ref):
        # x_ref: (tm, H) compute_dtype   w_ref: (tn_or_I, H) compute_dtype
        # b_ref: (1, tn_or_I) f32        o_ref: (tm, tn_or_I)
        # Contract on H (last dim of both) -> consumes the PyTorch (I, H) weight layout directly,
        # no host-side transpose. f32 accumulation on the MXU.
        acc = lax.dot_general(
            x_ref[...], w_ref[...],
            dimension_numbers=(((1,), (1,)), ((), ())),
            preferred_element_type=jnp.float32)
        acc = acc + b_ref[...]
        o_ref[...] = act(acc).astype(o_ref.dtype)

    return kernel


def bert_intermediate(hidden_states, weight, bias, *,
                      tm=512, tn=512,
                      compute_dtype=jnp.bfloat16,
                      out_dtype=None,
                      approximate_gelu=False,
                      vmem_limit_bytes=None,
                      force_tiled=False):
    """gelu(hidden_states @ W^T + b), W in PyTorch nn.Linear layout.

    hidden_states: [B, S, H]
    weight:        [I, H]   (consumed directly; no transpose is ever materialized)
    bias:          [I]
    returns:       [B, S, I] in out_dtype (default: hidden_states.dtype)

    Production path: bf16 MXU operands (compute_dtype default), f32 accumulation, f32 bias +
    GELU, exact erf. Use compute_dtype=jnp.float32 for bit-tight parity with PyTorch, and
    approximate_gelu=True to move the transcendental to the EUP slot on v6e/v7x.

    Per-generation knobs:
      v7x : 64 MiB VMEM/TC -> resident budget already capped here (vmem_limit <= 56 MiB);
            tm=384-512; 1-D row grid shards cleanly across the 2 TensorCores.
      v6e : 128 MiB VMEM -> defaults fine; if you force the tiled path, use tm=768-1024 and
            vmem_limit_bytes ~ 64-96 MiB to cross the ~650 FLOP/byte ridge.
      v5e : raise vmem_limit_bytes above the 16 MiB scoped default for bf16 weight-resident
            BERT-large; exact erf is fine (197 TF/s MXU hides the epilogue).
    """
    B, S, H = hidden_states.shape
    I, H2 = weight.shape
    assert H2 == H, f"weight must be (intermediate, hidden)=(I,{H}), got {weight.shape}"
    M = B * S

    if out_dtype is None:
        out_dtype = hidden_states.dtype
    bpe_c = jnp.dtype(compute_dtype).itemsize
    bpe_o = jnp.dtype(out_dtype).itemsize

    # Operand casts (the only extra host-side passes; explicitly requested: bf16 MXU operands).
    x2d = hidden_states.reshape(M, H).astype(compute_dtype)
    w2d = weight.astype(compute_dtype)
    b2d = bias.reshape(1, I).astype(jnp.float32)

    # ---- tile sizing (sublane 8 / lane 128 alignment; full-dim blocks are always legal) ----
    if tm >= M:
        tm = M                       # single row block, block == full dim -> always layout-legal
    else:
        tm = max(8, (tm // 8) * 8)   # partial last row block handled by Pallas OOB semantics
    if tn >= I:
        tn = I
    else:
        tn = max(128, (tn // 128) * 128)

    kernel = _make_kernel(approximate_gelu)
    cost = pl.CostEstimate(
        flops=2 * M * H * I,
        transcendentals=M * I,
        bytes_accessed=M * H * bpe_c + I * H * bpe_c + 4 * I + M * I * bpe_o)

    # ---- weight-resident decision (budget re-derived for v7x's 64 MiB/TC) ----
    VMEM_BUDGET = 44 << 20  # conservative: leaves headroom on v7x, trivially fits v5e/v6e

    def resident_vmem(tm_):
        return (2 * I * H * bpe_c          # W: 2-buffer allocation; constant index => single DMA
                + 2 * I * 4                # bias (f32), resident
                + 2 * tm_ * H * bpe_c      # x tile, double-buffered
                + 2 * tm_ * I * bpe_o      # out tile, double-buffered
                + 3 * tm_ * I * 4)         # f32 accumulator + GELU epilogue temporaries

    tm_res = tm
    while resident_vmem(tm_res) > VMEM_BUDGET and tm_res > 128:
        tm_res = max(128, _round_up(tm_res // 2, 8))
    weight_resident = (not force_tiled) and resident_vmem(tm_res) <= VMEM_BUDGET

    if weight_resident:
        # 1-D grid over M row blocks; W and bias have constant index maps -> DMA'd from HBM once,
        # kernel is MXU-bound. Row axis is 'parallel' -> balanced megacore sharding on v7x.
        # TODO(synk): use pipeline_mode=pl.Buffered(1) on the constant-index W/bias specs (when
        # available in the installed JAX) to drop the second buffer allocation; the budget above
        # already accounts for the 2x allocation so this is VMEM headroom only.
        tm = tm_res
        grid = (pl.cdiv(M, tm),)
        in_specs = [
            pl.BlockSpec((tm, H), lambda i: (i, 0)),   # activation row block, full K
            pl.BlockSpec((I, H), lambda i: (0, 0)),    # full weight, resident
            pl.BlockSpec((1, I), lambda i: (0, 0)),    # bias, resident
        ]
        out_specs = pl.BlockSpec((tm, I), lambda i: (i, 0))
        dims = ("parallel",)
        est = resident_vmem(tm)
    else:
        # Tiled fallback (weight too large for VMEM): rows outer ('parallel', large & balanced
        # for megacore), cols inner ('arbitrary'); x block is constant across the inner axis so
        # it is fetched once per row block, W is re-streamed.
        ni, nj = pl.cdiv(M, tm), pl.cdiv(I, tn)
        grid = (ni, nj)
        in_specs = [
            pl.BlockSpec((tm, H), lambda i, j: (i, 0)),
            pl.BlockSpec((tn, H), lambda i, j: (j, 0)),
            pl.BlockSpec((1, tn), lambda i, j: (0, j)),
        ]
        out_specs = pl.BlockSpec((tm, tn), lambda i, j: (i, j))
        dims = ("parallel", "arbitrary")
        est = (2 * tm * H * bpe_c + 2 * tn * H * bpe_c + 2 * tn * 4
               + 2 * tm * tn * bpe_o + 3 * tm * tn * 4)

    if vmem_limit_bytes is None and est > (12 << 20):
        # Raise the scoped-VMEM limit only when needed; cap v7x-safe (64 MiB/TC physical).
        vmem_limit_bytes = min(est + est // 4 + (2 << 20), 56 << 20)

    out = pl.pallas_call(
        kernel,
        out_shape=jax.ShapeDtypeStruct((M, I), out_dtype),
        grid_spec=pltpu.PrefetchScalarGridSpec(
            num_scalar_prefetch=0,
            grid=grid,
            in_specs=in_specs,
            out_specs=out_specs,
        ),
        compiler_params=pltpu.CompilerParams(
            dimension_semantics=dims,
            vmem_limit_bytes=vmem_limit_bytes,
        ),
        cost_estimate=cost,
    )(x2d, w2d, b2d)

    return out.reshape(B, S, I)


def _reference(hidden_states, weight, bias):
    x = jnp.einsum("bsh,ih->bsi", hidden_states, weight) + bias
    return x * 0.5 * (1.0 + lax.erf(x / math.sqrt(2.0)))


if __name__ == "__main__":
    # Small BERT-like synthetic config: hidden_size=32, intermediate_size=128, 'gelu' act.
    batch, seq, hidden, intermediate = 2, 8, 32, 128

    key = jax.random.PRNGKey(0)
    kx, kw, kb = jax.random.split(key, 3)
    hidden_states = jax.random.normal(kx, (batch, seq, hidden), dtype=jnp.float32)
    bound = 1.0 / math.sqrt(hidden)
    weight = jax.random.uniform(kw, (intermediate, hidden), jnp.float32, -bound, bound)
    bias = jax.random.uniform(kb, (intermediate,), jnp.float32, -bound, bound)

    ref = _reference(hidden_states, weight, bias)

    # 1) Reference-parity path: f32 MXU operands + exact erf GELU (weight-resident layout).
    out_f32 = jax.block_until_ready(
        bert_intermediate(hidden_states, weight, bias, compute_dtype=jnp.float32))
    assert out_f32.shape == (batch, seq, intermediate)
    assert jnp.allclose(out_f32, ref, atol=1e-5, rtol=1e-5), "f32 kernel mismatch vs reference"

    # 2) Default production path: bf16 MXU operands, f32 accumulation + exact erf.
    out_bf16 = jax.block_until_ready(bert_intermediate(hidden_states, weight, bias))
    assert jnp.allclose(out_bf16, ref, atol=2e-2, rtol=2e-2), "bf16 kernel mismatch vs reference"

    # 3) EUP-friendly tanh-GELU epilogue (production knob for v6e/v7x epilogue-bound configs).
    out_tanh = jax.block_until_ready(
        bert_intermediate(hidden_states, weight, bias,
                          compute_dtype=jnp.float32, approximate_gelu=True))
    assert jnp.allclose(out_tanh, ref, atol=1e-2, rtol=1e-2), "tanh-GELU mismatch vs reference"

    # 4) Forced tiled (weight-streaming) fallback path.
    out_tiled = jax.block_until_ready(
        bert_intermediate(hidden_states, weight, bias,
                          compute_dtype=jnp.float32, force_tiled=True))
    assert jnp.allclose(out_tiled, ref, atol=1e-5, rtol=1e-5), "tiled-path mismatch vs reference"

    # 5) Ragged shapes with NO host-side pad/slice: M=80 not a multiple of tm=32 (partial last
    #    row block), intermediate=96 not a multiple of 128 (full-dim N block).
    hs2 = jax.random.normal(kx, (2, 40, hidden), dtype=jnp.float32)
    w2 = jax.random.uniform(kw, (96, hidden), jnp.float32, -bound, bound)
    b2 = jax.random.uniform(kb, (96,), jnp.float32, -bound, bound)
    out2 = jax.block_until_ready(
        bert_intermediate(hs2, w2, b2, compute_dtype=jnp.float32, tm=32))
    assert out2.shape == (2, 40, 96)
    assert jnp.allclose(out2, _reference(hs2, w2, b2), atol=1e-5, rtol=1e-5), \
        "ragged-shape kernel mismatch vs reference"

    print("KERNEL_OK")
</pallas_src>

<mosaic_0001>
module attributes {stable_mosaic.version = 11 : i64} {
  func.func @kernel(%arg0: i32, %arg1: memref<16x32xf32, #tpu.memory_space<vmem>>, %arg2: memref<128x32xf32, #tpu.memory_space<vmem>>, %arg3: memref<1x128xf32, #tpu.memory_space<vmem>>, %arg4: memref<16x128xf32, #tpu.memory_space<vmem>>) attributes {dimension_semantics = [#tpu.dimension_semantics<parallel>], iteration_bounds = array<i64: 1>, scalar_prefetch = 0 : i64, scratch_operands = 0 : i64, tpu.core_type = #tpu.core_type<tc>, window_params = [{transform_indices = @transform_0, window_bounds = array<i64: 16, 32>}, {pipeline_mode = #tpu.pipeline_mode<synchronous>, transform_indices = @transform_1, window_bounds = array<i64: 128, 32>}, {pipeline_mode = #tpu.pipeline_mode<synchronous>, transform_indices = @transform_2, window_bounds = array<i64: 1, 128>}, {transform_indices = @transform_3, window_bounds = array<i64: 16, 128>}]} {
    %c0 = arith.constant 0 : index
    %c0_0 = arith.constant 0 : index
    %0 = vector.load %arg1[%c0, %c0_0] : memref<16x32xf32, #tpu.memory_space<vmem>>, vector<16x32xf32>
    %c0_1 = arith.constant 0 : index
    %c0_2 = arith.constant 0 : index
    %1 = vector.load %arg2[%c0_1, %c0_2] : memref<128x32xf32, #tpu.memory_space<vmem>>, vector<128x32xf32>
    %cst = arith.constant dense<0.000000e+00> : vector<16x128xf32>
    %2 = tpu.matmul %0, %1, %cst {dimension_numbers = #tpu.dot_dimension_numbers<[1], [1], [0], [0], [0, 0, 1, 0], [], []>} : vector<16x32xf32>, vector<128x32xf32>, vector<16x128xf32> -> vector<16x128xf32>
    %c0_3 = arith.constant 0 : index
    %c0_4 = arith.constant 0 : index
    %3 = vector.load %arg3[%c0_3, %c0_4] : memref<1x128xf32, #tpu.memory_space<vmem>>, vector<1x128xf32>
    %4 = vector.broadcast %3 : vector<1x128xf32> to vector<16x128xf32>
    %5 = arith.addf %2, %4 : vector<16x128xf32>
    %cst_5 = arith.constant 0.707106769 : f32
    %6 = vector.broadcast %cst_5 : f32 to vector<16x128xf32>
    %7 = arith.mulf %5, %6 : vector<16x128xf32>
    %8 = math.erf %7 : vector<16x128xf32>
    %cst_6 = arith.constant 1.000000e+00 : f32
    %9 = vector.broadcast %cst_6 : f32 to vector<16x128xf32>
    %10 = arith.addf %9, %8 : vector<16x128xf32>
    %cst_7 = arith.constant 5.000000e-01 : f32
    %11 = vector.broadcast %cst_7 : f32 to vector<16x128xf32>
    %12 = arith.mulf %11, %10 : vector<16x128xf32>
    %13 = arith.mulf %5, %12 : vector<16x128xf32>
    %c0_8 = arith.constant 0 : index
    %c0_9 = arith.constant 0 : index
    %14 = vector.load %arg4[%c0_8, %c0_9] : memref<16x128xf32, #tpu.memory_space<vmem>>, vector<16x128xf32>
    tpu.vector_store %arg4[%c0_8, %c0_9], %13 {strides = array<i32>} : memref<16x128xf32, #tpu.memory_space<vmem>>, vector<16x128xf32>,
    return
  }
  func.func @transform_0(%arg0: i32) -> (i32, i32) {
    %c0_i32 = arith.constant 0 : i32
    %c0_i32_0 = arith.constant 0 : i32
    return %arg0, %c0_i32 : i32, i32
  }
  func.func @transform_1(%arg0: i32) -> (i32, i32) {
    %c0_i32 = arith.constant 0 : i32
    %c0_i32_0 = arith.constant 0 : i32
    %c0_i32_1 = arith.constant 0 : i32
    return %c0_i32, %c0_i32_0 : i32, i32
  }
  func.func @transform_2(%arg0: i32) -> (i32, i32) {
    %c0_i32 = arith.constant 0 : i32
    %c0_i32_0 = arith.constant 0 : i32
    %c0_i32_1 = arith.constant 0 : i32
    return %c0_i32, %c0_i32_0 : i32, i32
  }
  func.func @transform_3(%arg0: i32) -> (i32, i32) {
    %c0_i32 = arith.constant 0 : i32
    %c0_i32_0 = arith.constant 0 : i32
    return %arg0, %c0_i32 : i32, i32
  }
}

</mosaic_0001>

<llo_original>
// kernel: tpu_custom_call.1
$region0: #{tpu_custom_call.1}
  #allocation0 [shape = 'u32[]', space=smem, size = 0x4, offset = 0x4, fixed_abs, tag = 'smem constant byte address 0x4 - core index']
  #allocation1 [shape = 'u32[144,128]{1,0:T(1,128)}', space=vmem, size = 0x12000, scoped, tag = 'internal scratch']
  %s0 = inlined_call_operand.vmem [shape: f32[16,32], index: 0, kind: input, shape index: {}]
  %s1 = inlined_call_operand.vmem [shape: f32[128,32], index: 1, kind: input, shape index: {}]
  %s2 = inlined_call_operand.vmem [shape: f32[1,128], index: 2, kind: input, shape index: {}]
  %s3 = inlined_call_operand.hbm [shape: f32[16,128], index: 3, kind: output, shape index: {}]
  %s4 = sld [smem:[#allocation0]]
  $region22: #{tpu_custom_call.1} parent=0
    _
  %s6 = ssub.s32 1, %s4
  %s7 = scalar_select 0, %s6, %s4
  $region1: #{tpu_custom_call.1} parent=0
    #allocation2 [shape = 'u8[8192]{0}', space=vmem, size = 0x2000, scoped, tag = 'output window, operand 0, single buffered']
    #allocation3 [shape = 's32[1]{0}', space=sflag, size = 0x4, scoped, tag = 'scoped memory for tpu_custom_call.1']
    %8 = vsyncpa [#allocation3], 0
    // Predicated region
    $region2: #{tpu_custom_call.1} parent=1 // pred_check
      _
    $region3: #{tpu_custom_call.1} parent=1 // pred_check_branch
      %10 = sbr.rel (0) target = $region5
    $region4: #{tpu_custom_call.1} parent=1 // pred_region
      _
    $region5: #{tpu_custom_call.1} parent=1 // pred_fallthru
      _
    // Predicated region
    $region6: #{tpu_custom_call.1} parent=1 // pred_check
      _
    $region7: #{tpu_custom_call.1} parent=1 // pred_check_branch
      %12 = sbr.rel (0) target = $region9
    $region8: #{tpu_custom_call.1} parent=1 // pred_region
      _
    $region9: #{tpu_custom_call.1} parent=1 // pred_fallthru
      _
    // Predicated region
    $region10: #{tpu_custom_call.1} parent=1 // pred_check
      _
    $region11: #{tpu_custom_call.1} parent=1 // pred_check_branch
      %14 = sbr.rel (0) target = $region13
    $region12: #{tpu_custom_call.1} parent=1 // pred_region
      _
    $region13: #{tpu_custom_call.1} parent=1 // pred_fallthru
      _
    %v15 = vld [vmem:[%s0] sm:$0xff]
    %v16 = vld [vmem:[%s0 + $0x8] sm:$0xff]
    %v17 = vld [vmem:[%s1] sm:$0xff]
    %v18 = vld [vmem:[%s1 + $0x8] sm:$0xff]
    %v19 = vld [vmem:[%s1 + $0x10] sm:$0xff]
    %v20 = vld [vmem:[%s1 + $0x18] sm:$0xff]
    %v21 = vld [vmem:[%s1 + $0x20] sm:$0xff]
    %v22 = vld [vmem:[%s1 + $0x28] sm:$0xff]
    %v23 = vld [vmem:[%s1 + $0x30] sm:$0xff]
    %v24 = vld [vmem:[%s1 + $0x38] sm:$0xff]
    %v25 = vld [vmem:[%s1 + $0x40] sm:$0xff]
    %v26 = vld [vmem:[%s1 + $0x48] sm:$0xff]
    %v27 = vld [vmem:[%s1 + $0x50] sm:$0xff]
    %v28 = vld [vmem:[%s1 + $0x58] sm:$0xff]
    %v29 = vld [vmem:[%s1 + $0x60] sm:$0xff]
    %v30 = vld [vmem:[%s1 + $0x68] sm:$0xff]
    %v31 = vld [vmem:[%s1 + $0x70] sm:$0xff]
    %v32 = vld [vmem:[%s1 + $0x78] sm:$0xff]
    %v33 = vld [vmem:[%s2] sm:$0x1]
    %v35 = vlaneseq
    %v36 = vshrl.u32 %v35, 7
    %v37 = vsub.s32 0, %v36
    %v38 = vrot.slane %v33, %v37
    %vm40 = vcmask 261120
    %v42 = vsel %vm40, %v15, 0
    %v45 = vsel %vm40, %v16, 0
    %v48 = vsel %vm40, %v17, 0
    %v51 = vsel %vm40, %v18, 0
    %v54 = vsel %vm40, %v19, 0
    %v57 = vsel %vm40, %v20, 0
    %v60 = vsel %vm40, %v21, 0
    %v63 = vsel %vm40, %v22, 0
    %v66 = vsel %vm40, %v23, 0
    %v69 = vsel %vm40, %v24, 0
    %v72 = vsel %vm40, %v25, 0
    %v75 = vsel %vm40, %v26, 0
    %v78 = vsel %vm40, %v27, 0
    %v81 = vsel %vm40, %v28, 0
    %v84 = vsel %vm40, %v29, 0
    %v87 = vsel %vm40, %v30, 0
    %v90 = vsel %vm40, %v31, 0
    %v93 = vsel %vm40, %v32, 0
    %95 = vmatprep.subr.mxu0 0.0
    %96 = vmatpush1.xpose.msra.mxu0 %v48
    %97 = vmatprep.subr.mxu0 0.0
    %98 = vmatpush1.xpose.msra.mxu0 %v51
    %99 = vmatprep.subr.mxu0 0.0
    %100 = vmatpush1.xpose.msra.mxu0 %v54
    %101 = vmatprep.subr.mxu0 0.0
    %102 = vmatpush1.xpose.msra.mxu0 %v57
    %103 = vmatprep.subr.mxu0 0.0
    %104 = vmatpush1.xpose.msra.mxu0 %v60
    %105 = vmatprep.subr.mxu0 0.0
    %106 = vmatpush1.xpose.msra.mxu0 %v63
    %107 = vmatprep.subr.mxu0 0.0
    %108 = vmatpush1.xpose.msra.mxu0 %v66
    %109 = vmatprep.subr.mxu0 0.0
    %110 = vmatpush1.xpose.msra.mxu0 %v69
    %111 = vmatprep.subr.mxu0 0.0
    %112 = vmatpush1.xpose.msra.mxu0 %v72
    %113 = vmatprep.subr.mxu0 0.0
    %114 = vmatpush1.xpose.msra.mxu0 %v75
    %115 = vmatprep.subr.mxu0 0.0
    %116 = vmatpush1.xpose.msra.mxu0 %v78
    %117 = vmatprep.subr.mxu0 0.0
    %118 = vmatpush1.xpose.msra.mxu0 %v81
    %119 = vmatprep.subr.mxu0 0.0
    %120 = vmatpush1.xpose.msra.mxu0 %v84
    %121 = vmatprep.subr.mxu0 0.0
    %122 = vmatpush1.xpose.msra.mxu0 %v87
    %123 = vmatprep.subr.mxu0 0.0
    %124 = vmatpush1.xpose.msra.mxu0 %v90
    %125 = vmatprep.subr.mxu0 0.0
    %126 = vmatpush1.xpose.msra.mxu0 %v93
    %127 = vmatprep.subr.mxu0 0.0
    %128 = vmatpush1.xpose.msra.mxu0 0.0
    %129 = vmatprep.subr.mxu0 0.0
    %130 = vmatpush1.xpose.msra.mxu0 0.0
    %131 = vmatprep.subr.mxu0 0.0
    %132 = vmatpush1.xpose.msra.mxu0 0.0
    %133 = vmatprep.subr.mxu0 0.0
    %134 = vmatpush1.xpose.msra.mxu0 0.0
    %135 = vmatprep.subr.mxu0 0.0
    %136 = vmatpush1.xpose.msra.mxu0 0.0
    %137 = vmatprep.subr.mxu0 0.0
    %138 = vmatpush1.xpose.msra.mxu0 0.0
    %139 = vmatprep.subr.mxu0 0.0
    %140 = vmatpush1.xpose.msra.mxu0 0.0
    %141 = vmatprep.subr.mxu0 0.0
    %142 = vmatpush1.xpose.msra.mxu0 0.0
    %143 = vmatprep.subr.mxu0 0.0
    %144 = vmatpush1.xpose.msra.mxu0 0.0
    %145 = vmatprep.subr.mxu0 0.0
    %146 = vmatpush1.xpose.msra.mxu0 0.0
    %147 = vmatprep.subr.mxu0 0.0
    %148 = vmatpush1.xpose.msra.mxu0 0.0
    %149 = vmatprep.subr.mxu0 0.0
    %150 = vmatpush1.xpose.msra.mxu0 0.0
    %151 = vmatprep.subr.mxu0 0.0
    %152 = vmatpush1.xpose.msra.mxu0 0.0
    %153 = vmatprep.subr.mxu0 0.0
    %154 = vmatpush1.xpose.msra.mxu0 0.0
    %155 = vmatprep.subr.mxu0 0.0
    %156 = vmatpush1.xpose.msra.mxu0 0.0
    %157 = vmatprep.subr.mxu0 0.0
    %158 = vmatpush1.xpose.msra.mxu0 0.0
    %159 = vmatprep.mubr.f32.mxu0 0.0
    %160 = vmatmul.mubr.f32.gmra.mrb[0].mxu0 %v42
    %v161 = vpop.f32.mrb[0].mxu0
    %v162 = vadd.f32 %v38, %v161
    %v163 = vpop.f32.mrb[0].mxu0
    %164 = vmatprep.mubr.f32.mxu0 0.0
    %165 = vmatmul.mubr.f32.gmra.mrb[0].mxu0 %v45
    %v166 = vpop.f32.mrb[0].mxu0
    %v167 = vadd.f32 %v38, %v166
    %v168 = vpop.f32.mrb[0].mxu0
    %169 = vdwg.mxu0
    %v170 = vmul.f32 %v162, 0.70710677
    %v171 = vmul.f32 %v167, 0.70710677
    %v172 = verf.f32.pop %v170
    %v173 = verf.f32.pop %v171
    %v174 = vadd.f32 %v172, 1.0
    %v175 = vadd.f32 %v173, 1.0
    %v176 = vmul.f32 %v174, 0.5
    %v177 = vmul.f32 %v175, 0.5
    %v178 = vmul.f32 %v162, %v176
    %v179 = vmul.f32 %v167, %v177
    %180 = vst [vmem:[#allocation2] sm:$0xff] %v178
    %181 = vst [vmem:[#allocation2 + $0x8] sm:$0xff] %v179
    // Predicated region
    $region14: #{tpu_custom_call.1} parent=1 // pred_check
      _
    $region15: #{tpu_custom_call.1} parent=1 // pred_check_branch
      %183 = sbr.rel (0) target = $region17
    $region16: #{tpu_custom_call.1} parent=1 // pred_region
      %s185 = ssub.s32 256, 256
      %186 = vsyncadd [#allocation3], %s185
      %s187 = sshll.u32 [#allocation2], 4
      %s188 = int_to_ptr.vmem [resolvable:$true] %s187
      %193 = dma.vmem_to_hbm [thread:$0]  %s188, 256, %s3, [#allocation3], 128, 128, 8
    $region17: #{tpu_custom_call.1} parent=1 // pred_fallthru
      _
    // Predicated region
    $region18: #{tpu_custom_call.1} parent=1 // pred_check
      _
    $region19: #{tpu_custom_call.1} parent=1 // pred_check_branch
      %195 = sbr.rel (0) target = $region21
    $region20: #{tpu_custom_call.1} parent=1 // pred_region
      %196 = dma.done [#allocation3], 256
    $region21: #{tpu_custom_call.1} parent=1 // pred_fallthru
      _
    %197 = vsyncpa [#allocation3], 1

</llo_original>
